<compile_context>
chip_gen: v7x
topology: tpu7x:2x2x1
jax: 0.10.0
libtpu: 0.0.40
codegen_flags: <defaults>
</compile_context>

<pallas_src>
import jax
import jax.numpy as jnp
from jax.experimental import pallas as pl
from jax.experimental.pallas import tpu as pltpu

DIM_LIST = [8, 6, 4, 1]


def _mlp_tanh_kernel(w1_ref, b1_ref, w2_ref, b2_ref, w3_ref, b3_ref, x_ref, o_ref):
    """x_ref: (8, R_blk, 128) VMEM tile (feature-major; batch on (row, lane)).
    o_ref: (R_blk, 128) VMEM tile. w*_ref: (out, in) f32 SMEM, b*_ref: (out,) f32 SMEM.
    Weights/biases arrive pre-folded so every layer is just tanh(W' h + b')."""

    def dense_tanh(rows_in, w_ref, b_ref, n_out, n_in):
        outs = []
        for o in range(n_out):                      # fully unrolled: fan-outs are 6/4/1
            acc = rows_in[0] * w_ref[o, 0] + b_ref[o]
            for i in range(1, n_in):                # fan-ins are 8/6/4
                acc = acc + rows_in[i] * w_ref[o, i]
            outs.append(jnp.tanh(acc))              # single EUP op on dense vregs
        return outs

    # 8 dense (R_blk, 128) per-feature slabs (static first-axis indexing, no relayout).
    h = [x_ref[f] for f in range(DIM_LIST[0])]
    h = dense_tanh(h, w1_ref, b1_ref, DIM_LIST[1], DIM_LIST[0])
    h = dense_tanh(h, w2_ref, b2_ref, DIM_LIST[2], DIM_LIST[1])
    h = dense_tanh(h, w3_ref, b3_ref, DIM_LIST[3], DIM_LIST[2])
    # Only remaining sigmoid affine (output dim is 1). Dense, unmasked store.
    o_ref[...] = 0.5 * h[0] + 0.5


def model_sigmoid_forward(x, params, max_tile_rows=512):
    """x: (B, 8) float32 (PyTorch convention); params: w1,b1,w2,b2,w3,b3 in
    nn.Linear layout (w: (out, in), b: (out,)). Returns (B, 1) float32."""
    B, F = x.shape
    assert F == DIM_LIST[0]

    # ---- Fold sigmoid(z) = 0.5*tanh(0.5*z) + 0.5 into the tiny weight matrices ----
    w1, b1 = params["w1"].astype(jnp.float32), params["b1"].astype(jnp.float32)
    w2, b2 = params["w2"].astype(jnp.float32), params["b2"].astype(jnp.float32)
    w3, b3 = params["w3"].astype(jnp.float32), params["b3"].astype(jnp.float32)
    w1f, b1f = 0.5 * w1, 0.5 * b1
    w2f, b2f = 0.25 * w2, 0.5 * b2 + 0.25 * jnp.sum(w2, axis=1)
    w3f, b3f = 0.25 * w3, 0.5 * b3 + 0.25 * jnp.sum(w3, axis=1)

    # ---- Layout: batch element n -> (row, lane) = (n // 128, n % 128) ----
    r_total = pl.cdiv(B, 128)
    r_total = 8 * pl.cdiv(r_total, 8)          # sublane-dense: rows multiple of 8
    n_pad = r_total * 128                      # pad only to a 1024-element multiple

    # Tile rows: big tiles amortize per-grid-step overhead; cap so the grid has
    # >= 2 steps when possible (lets "parallel" shard across both v7x TensorCores).
    r_blk = min(max_tile_rows, r_total)
    if r_total > 8:
        r_blk = min(r_blk, 8 * pl.cdiv(pl.cdiv(r_total, 2), 8))

    # Single fused pad + transpose + reshape into the feature-major dense slab.
    # TODO(synk): accept/produce feature-major (8, B) activations upstream to drop
    # this extra HBM relayout pass entirely.
    x_slab = jnp.pad(x.astype(jnp.float32), ((0, n_pad - B), (0, 0)))
    x_slab = x_slab.T.reshape(DIM_LIST[0], r_total, 128)

    smem = pl.BlockSpec(memory_space=pltpu.MemorySpace.SMEM)

    out = pl.pallas_call(
        _mlp_tanh_kernel,
        out_shape=jax.ShapeDtypeStruct((r_total, 128), jnp.float32),
        grid=(pl.cdiv(r_total, r_blk),),
        in_specs=[smem] * 6
        + [pl.BlockSpec((DIM_LIST[0], r_blk, 128), lambda i: (0, i, 0))],
        out_specs=pl.BlockSpec((r_blk, 128), lambda i: (i, 0)),
        compiler_params=pltpu.CompilerParams(
            dimension_semantics=("parallel",),
            vmem_limit_bytes=32 * 1024 * 1024,
        ),
    )(w1f, b1f, w2f, b2f, w3f, b3f, x_slab)

    # Lane-dense output slab -> (B, 1): free reshape + slice, no transpose.
    return out.reshape(n_pad)[:B].reshape(B, 1)


def init_params(key):
    """Mimics PyTorch nn.Linear defaults: U[-1/sqrt(fan_in), 1/sqrt(fan_in)].
    Weights stored as (out_features, in_features), biases as (out_features,)."""
    params = {}
    for idx in range(len(DIM_LIST) - 1):
        fan_in, fan_out = DIM_LIST[idx], DIM_LIST[idx + 1]
        key, kw, kb = jax.random.split(key, 3)
        bound = 1.0 / jnp.sqrt(jnp.float32(fan_in))
        params[f"w{idx + 1}"] = jax.random.uniform(
            kw, (fan_out, fan_in), jnp.float32, -bound, bound)
        params[f"b{idx + 1}"] = jax.random.uniform(
            kb, (fan_out,), jnp.float32, -bound, bound)
    return params


def reference_forward(x, params):
    h = x
    for idx in range(len(DIM_LIST) - 1):
        w = params[f"w{idx + 1}"]           # (out, in) -> x @ w.T + b, like nn.Linear
        b = params[f"b{idx + 1}"]
        h = jax.nn.sigmoid(h @ w.T + b)
    return h


if __name__ == "__main__":
    key = jax.random.PRNGKey(0)
    key, kx1, kx2 = jax.random.split(key, 3)
    params = init_params(key)

    # Small primary test (single grid step).
    batch = 8
    x = jax.random.normal(kx1, (batch, DIM_LIST[0]), dtype=jnp.float32)
    y = jax.block_until_ready(model_sigmoid_forward(x, params))
    y_ref = reference_forward(x, params)
    assert y.shape == (batch, 1)
    assert jnp.allclose(y, y_ref, atol=2e-5, rtol=1e-4), "mismatch vs reference (batch=8)"

    # Multi-step grid with a partial edge block (exercises tiling path).
    batch2 = 2500
    x2 = jax.random.normal(kx2, (batch2, DIM_LIST[0]), dtype=jnp.float32)
    y2 = jax.block_until_ready(model_sigmoid_forward(x2, params))
    y2_ref = reference_forward(x2, params)
    assert y2.shape == (batch2, 1)
    assert jnp.allclose(y2, y2_ref, atol=2e-5, rtol=1e-4), "mismatch vs reference (batch=2500)"

    print("KERNEL_OK")
</pallas_src>

<mosaic_0001>
module attributes {stable_mosaic.version = 11 : i64} {
  func.func @_mlp_tanh_kernel(%arg0: i32, %arg1: memref<6x8xf32, #tpu.memory_space<smem>>, %arg2: memref<6xf32, #tpu.memory_space<smem>>, %arg3: memref<4x6xf32, #tpu.memory_space<smem>>, %arg4: memref<4xf32, #tpu.memory_space<smem>>, %arg5: memref<1x4xf32, #tpu.memory_space<smem>>, %arg6: memref<1xf32, #tpu.memory_space<smem>>, %arg7: memref<8x8x128xf32, #tpu.memory_space<vmem>>, %arg8: memref<8x128xf32, #tpu.memory_space<vmem>>) attributes {dimension_semantics = [#tpu.dimension_semantics<parallel>], iteration_bounds = array<i64: 1>, scalar_prefetch = 0 : i64, scratch_operands = 0 : i64, tpu.core_type = #tpu.core_type<tc>, window_params = [{transform_indices = @transform_0, window_bounds = array<i64: 6, 8>}, {transform_indices = @transform_1, window_bounds = array<i64: 6>}, {transform_indices = @transform_2, window_bounds = array<i64: 4, 6>}, {transform_indices = @transform_3, window_bounds = array<i64: 4>}, {transform_indices = @transform_4, window_bounds = array<i64: 1, 4>}, {transform_indices = @transform_5, window_bounds = array<i64: 1>}, {transform_indices = @transform_6, window_bounds = array<i64: 8, 8, 128>}, {transform_indices = @transform_7, window_bounds = array<i64: 8, 128>}]} {
    %c0 = arith.constant 0 : index
    %c0_0 = arith.constant 0 : index
    %c0_1 = arith.constant 0 : index
    %0 = vector.load %arg7[%c0, %c0_0, %c0_1] : memref<8x8x128xf32, #tpu.memory_space<vmem>>, vector<1x8x128xf32>
    %1 = vector.shape_cast %0 : vector<1x8x128xf32> to vector<8x128xf32>
    %c1 = arith.constant 1 : index
    %c0_2 = arith.constant 0 : index
    %c0_3 = arith.constant 0 : index
    %2 = vector.load %arg7[%c1, %c0_2, %c0_3] : memref<8x8x128xf32, #tpu.memory_space<vmem>>, vector<1x8x128xf32>
    %3 = vector.shape_cast %2 : vector<1x8x128xf32> to vector<8x128xf32>
    %c2 = arith.constant 2 : index
    %c0_4 = arith.constant 0 : index
    %c0_5 = arith.constant 0 : index
    %4 = vector.load %arg7[%c2, %c0_4, %c0_5] : memref<8x8x128xf32, #tpu.memory_space<vmem>>, vector<1x8x128xf32>
    %5 = vector.shape_cast %4 : vector<1x8x128xf32> to vector<8x128xf32>
    %c3 = arith.constant 3 : index
    %c0_6 = arith.constant 0 : index
    %c0_7 = arith.constant 0 : index
    %6 = vector.load %arg7[%c3, %c0_6, %c0_7] : memref<8x8x128xf32, #tpu.memory_space<vmem>>, vector<1x8x128xf32>
    %7 = vector.shape_cast %6 : vector<1x8x128xf32> to vector<8x128xf32>
    %c4 = arith.constant 4 : index
    %c0_8 = arith.constant 0 : index
    %c0_9 = arith.constant 0 : index
    %8 = vector.load %arg7[%c4, %c0_8, %c0_9] : memref<8x8x128xf32, #tpu.memory_space<vmem>>, vector<1x8x128xf32>
    %9 = vector.shape_cast %8 : vector<1x8x128xf32> to vector<8x128xf32>
    %c5 = arith.constant 5 : index
    %c0_10 = arith.constant 0 : index
    %c0_11 = arith.constant 0 : index
    %10 = vector.load %arg7[%c5, %c0_10, %c0_11] : memref<8x8x128xf32, #tpu.memory_space<vmem>>, vector<1x8x128xf32>
    %11 = vector.shape_cast %10 : vector<1x8x128xf32> to vector<8x128xf32>
    %c6 = arith.constant 6 : index
    %c0_12 = arith.constant 0 : index
    %c0_13 = arith.constant 0 : index
    %12 = vector.load %arg7[%c6, %c0_12, %c0_13] : memref<8x8x128xf32, #tpu.memory_space<vmem>>, vector<1x8x128xf32>
    %13 = vector.shape_cast %12 : vector<1x8x128xf32> to vector<8x128xf32>
    %c7 = arith.constant 7 : index
    %c0_14 = arith.constant 0 : index
    %c0_15 = arith.constant 0 : index
    %14 = vector.load %arg7[%c7, %c0_14, %c0_15] : memref<8x8x128xf32, #tpu.memory_space<vmem>>, vector<1x8x128xf32>
    %15 = vector.shape_cast %14 : vector<1x8x128xf32> to vector<8x128xf32>
    %c0_16 = arith.constant 0 : index
    %c0_17 = arith.constant 0 : index
    %16 = memref.load %arg1[%c0_16, %c0_17] : memref<6x8xf32, #tpu.memory_space<smem>>
    %17 = vector.broadcast %16 : f32 to vector<8x128xf32>
    %18 = arith.mulf %1, %17 : vector<8x128xf32>
    %c0_18 = arith.constant 0 : index
    %19 = memref.load %arg2[%c0_18] : memref<6xf32, #tpu.memory_space<smem>>
    %20 = vector.broadcast %19 : f32 to vector<8x128xf32>
    %21 = arith.addf %18, %20 : vector<8x128xf32>
    %c0_19 = arith.constant 0 : index
    %c1_20 = arith.constant 1 : index
    %22 = memref.load %arg1[%c0_19, %c1_20] : memref<6x8xf32, #tpu.memory_space<smem>>
    %23 = vector.broadcast %22 : f32 to vector<8x128xf32>
    %24 = arith.mulf %3, %23 : vector<8x128xf32>
    %25 = arith.addf %21, %24 : vector<8x128xf32>
    %c0_21 = arith.constant 0 : index
    %c2_22 = arith.constant 2 : index
    %26 = memref.load %arg1[%c0_21, %c2_22] : memref<6x8xf32, #tpu.memory_space<smem>>
    %27 = vector.broadcast %26 : f32 to vector<8x128xf32>
    %28 = arith.mulf %5, %27 : vector<8x128xf32>
    %29 = arith.addf %25, %28 : vector<8x128xf32>
    %c0_23 = arith.constant 0 : index
    %c3_24 = arith.constant 3 : index
    %30 = memref.load %arg1[%c0_23, %c3_24] : memref<6x8xf32, #tpu.memory_space<smem>>
    %31 = vector.broadcast %30 : f32 to vector<8x128xf32>
    %32 = arith.mulf %7, %31 : vector<8x128xf32>
    %33 = arith.addf %29, %32 : vector<8x128xf32>
    %c0_25 = arith.constant 0 : index
    %c4_26 = arith.constant 4 : index
    %34 = memref.load %arg1[%c0_25, %c4_26] : memref<6x8xf32, #tpu.memory_space<smem>>
    %35 = vector.broadcast %34 : f32 to vector<8x128xf32>
    %36 = arith.mulf %9, %35 : vector<8x128xf32>
    %37 = arith.addf %33, %36 : vector<8x128xf32>
    %c0_27 = arith.constant 0 : index
    %c5_28 = arith.constant 5 : index
    %38 = memref.load %arg1[%c0_27, %c5_28] : memref<6x8xf32, #tpu.memory_space<smem>>
    %39 = vector.broadcast %38 : f32 to vector<8x128xf32>
    %40 = arith.mulf %11, %39 : vector<8x128xf32>
    %41 = arith.addf %37, %40 : vector<8x128xf32>
    %c0_29 = arith.constant 0 : index
    %c6_30 = arith.constant 6 : index
    %42 = memref.load %arg1[%c0_29, %c6_30] : memref<6x8xf32, #tpu.memory_space<smem>>
    %43 = vector.broadcast %42 : f32 to vector<8x128xf32>
    %44 = arith.mulf %13, %43 : vector<8x128xf32>
    %45 = arith.addf %41, %44 : vector<8x128xf32>
    %c0_31 = arith.constant 0 : index
    %c7_32 = arith.constant 7 : index
    %46 = memref.load %arg1[%c0_31, %c7_32] : memref<6x8xf32, #tpu.memory_space<smem>>
    %47 = vector.broadcast %46 : f32 to vector<8x128xf32>
    %48 = arith.mulf %15, %47 : vector<8x128xf32>
    %49 = arith.addf %45, %48 : vector<8x128xf32>
    %50 = math.tanh %49 : vector<8x128xf32>
    %c1_33 = arith.constant 1 : index
    %c0_34 = arith.constant 0 : index
    %51 = memref.load %arg1[%c1_33, %c0_34] : memref<6x8xf32, #tpu.memory_space<smem>>
    %52 = vector.broadcast %51 : f32 to vector<8x128xf32>
    %53 = arith.mulf %1, %52 : vector<8x128xf32>
    %c1_35 = arith.constant 1 : index
    %54 = memref.load %arg2[%c1_35] : memref<6xf32, #tpu.memory_space<smem>>
    %55 = vector.broadcast %54 : f32 to vector<8x128xf32>
    %56 = arith.addf %53, %55 : vector<8x128xf32>
    %c1_36 = arith.constant 1 : index
    %c1_37 = arith.constant 1 : index
    %57 = memref.load %arg1[%c1_36, %c1_37] : memref<6x8xf32, #tpu.memory_space<smem>>
    %58 = vector.broadcast %57 : f32 to vector<8x128xf32>
    %59 = arith.mulf %3, %58 : vector<8x128xf32>
    %60 = arith.addf %56, %59 : vector<8x128xf32>
    %c1_38 = arith.constant 1 : index
    %c2_39 = arith.constant 2 : index
    %61 = memref.load %arg1[%c1_38, %c2_39] : memref<6x8xf32, #tpu.memory_space<smem>>
    %62 = vector.broadcast %61 : f32 to vector<8x128xf32>
    %63 = arith.mulf %5, %62 : vector<8x128xf32>
    %64 = arith.addf %60, %63 : vector<8x128xf32>
    %c1_40 = arith.constant 1 : index
    %c3_41 = arith.constant 3 : index
    %65 = memref.load %arg1[%c1_40, %c3_41] : memref<6x8xf32, #tpu.memory_space<smem>>
    %66 = vector.broadcast %65 : f32 to vector<8x128xf32>
    %67 = arith.mulf %7, %66 : vector<8x128xf32>
    %68 = arith.addf %64, %67 : vector<8x128xf32>
    %c1_42 = arith.constant 1 : index
    %c4_43 = arith.constant 4 : index
    %69 = memref.load %arg1[%c1_42, %c4_43] : memref<6x8xf32, #tpu.memory_space<smem>>
    %70 = vector.broadcast %69 : f32 to vector<8x128xf32>
    %71 = arith.mulf %9, %70 : vector<8x128xf32>
    %72 = arith.addf %68, %71 : vector<8x128xf32>
    %c1_44 = arith.constant 1 : index
    %c5_45 = arith.constant 5 : index
    %73 = memref.load %arg1[%c1_44, %c5_45] : memref<6x8xf32, #tpu.memory_space<smem>>
    %74 = vector.broadcast %73 : f32 to vector<8x128xf32>
    %75 = arith.mulf %11, %74 : vector<8x128xf32>
    %76 = arith.addf %72, %75 : vector<8x128xf32>
    %c1_46 = arith.constant 1 : index
    %c6_47 = arith.constant 6 : index
    %77 = memref.load %arg1[%c1_46, %c6_47] : memref<6x8xf32, #tpu.memory_space<smem>>
    %78 = vector.broadcast %77 : f32 to vector<8x128xf32>
    %79 = arith.mulf %13, %78 : vector<8x128xf32>
    %80 = arith.addf %76, %79 : vector<8x128xf32>
    %c1_48 = arith.constant 1 : index
    %c7_49 = arith.constant 7 : index
    %81 = memref.load %arg1[%c1_48, %c7_49] : memref<6x8xf32, #tpu.memory_space<smem>>
    %82 = vector.broadcast %81 : f32 to vector<8x128xf32>
    %83 = arith.mulf %15, %82 : vector<8x128xf32>
    %84 = arith.addf %80, %83 : vector<8x128xf32>
    %85 = math.tanh %84 : vector<8x128xf32>
    %c2_50 = arith.constant 2 : index
    %c0_51 = arith.constant 0 : index
    %86 = memref.load %arg1[%c2_50, %c0_51] : memref<6x8xf32, #tpu.memory_space<smem>>
    %87 = vector.broadcast %86 : f32 to vector<8x128xf32>
    %88 = arith.mulf %1, %87 : vector<8x128xf32>
    %c2_52 = arith.constant 2 : index
    %89 = memref.load %arg2[%c2_52] : memref<6xf32, #tpu.memory_space<smem>>
    %90 = vector.broadcast %89 : f32 to vector<8x128xf32>
    %91 = arith.addf %88, %90 : vector<8x128xf32>
    %c2_53 = arith.constant 2 : index
    %c1_54 = arith.constant 1 : index
    %92 = memref.load %arg1[%c2_53, %c1_54] : memref<6x8xf32, #tpu.memory_space<smem>>
    %93 = vector.broadcast %92 : f32 to vector<8x128xf32>
    %94 = arith.mulf %3, %93 : vector<8x128xf32>
    %95 = arith.addf %91, %94 : vector<8x128xf32>
    %c2_55 = arith.constant 2 : index
    %c2_56 = arith.constant 2 : index
    %96 = memref.load %arg1[%c2_55, %c2_56] : memref<6x8xf32, #tpu.memory_space<smem>>
    %97 = vector.broadcast %96 : f32 to vector<8x128xf32>
    %98 = arith.mulf %5, %97 : vector<8x128xf32>
    %99 = arith.addf %95, %98 : vector<8x128xf32>
    %c2_57 = arith.constant 2 : index
    %c3_58 = arith.constant 3 : index
    %100 = memref.load %arg1[%c2_57, %c3_58] : memref<6x8xf32, #tpu.memory_space<smem>>
    %101 = vector.broadcast %100 : f32 to vector<8x128xf32>
    %102 = arith.mulf %7, %101 : vector<8x128xf32>
    %103 = arith.addf %99, %102 : vector<8x128xf32>
    %c2_59 = arith.constant 2 : index
    %c4_60 = arith.constant 4 : index
    %104 = memref.load %arg1[%c2_59, %c4_60] : memref<6x8xf32, #tpu.memory_space<smem>>
    %105 = vector.broadcast %104 : f32 to vector<8x128xf32>
    %106 = arith.mulf %9, %105 : vector<8x128xf32>
    %107 = arith.addf %103, %106 : vector<8x128xf32>
    %c2_61 = arith.constant 2 : index
    %c5_62 = arith.constant 5 : index
    %108 = memref.load %arg1[%c2_61, %c5_62] : memref<6x8xf32, #tpu.memory_space<smem>>
    %109 = vector.broadcast %108 : f32 to vector<8x128xf32>
    %110 = arith.mulf %11, %109 : vector<8x128xf32>
    %111 = arith.addf %107, %110 : vector<8x128xf32>
    %c2_63 = arith.constant 2 : index
    %c6_64 = arith.constant 6 : index
    %112 = memref.load %arg1[%c2_63, %c6_64] : memref<6x8xf32, #tpu.memory_space<smem>>
    %113 = vector.broadcast %112 : f32 to vector<8x128xf32>
    %114 = arith.mulf %13, %113 : vector<8x128xf32>
    %115 = arith.addf %111, %114 : vector<8x128xf32>
    %c2_65 = arith.constant 2 : index
    %c7_66 = arith.constant 7 : index
    %116 = memref.load %arg1[%c2_65, %c7_66] : memref<6x8xf32, #tpu.memory_space<smem>>
    %117 = vector.broadcast %116 : f32 to vector<8x128xf32>
    %118 = arith.mulf %15, %117 : vector<8x128xf32>
    %119 = arith.addf %115, %118 : vector<8x128xf32>
    %120 = math.tanh %119 : vector<8x128xf32>
    %c3_67 = arith.constant 3 : index
    %c0_68 = arith.constant 0 : index
    %121 = memref.load %arg1[%c3_67, %c0_68] : memref<6x8xf32, #tpu.memory_space<smem>>
    %122 = vector.broadcast %121 : f32 to vector<8x128xf32>
    %123 = arith.mulf %1, %122 : vector<8x128xf32>
    %c3_69 = arith.constant 3 : index
    %124 = memref.load %arg2[%c3_69] : memref<6xf32, #tpu.memory_space<smem>>
    %125 = vector.broadcast %124 : f32 to vector<8x128xf32>
    %126 = arith.addf %123, %125 : vector<8x128xf32>
    %c3_70 = arith.constant 3 : index
    %c1_71 = arith.constant 1 : index
    %127 = memref.load %arg1[%c3_70, %c1_71] : memref<6x8xf32, #tpu.memory_space<smem>>
    %128 = vector.broadcast %127 : f32 to vector<8x128xf32>
    %129 = arith.mulf %3, %128 : vector<8x128xf32>
    %130 = arith.addf %126, %129 : vector<8x128xf32>
    %c3_72 = arith.constant 3 : index
    %c2_73 = arith.constant 2 : index
    %131 = memref.load %arg1[%c3_72, %c2_73] : memref<6x8xf32, #tpu.memory_space<smem>>
    %132 = vector.broadcast %131 : f32 to vector<8x128xf32>
    %133 = arith.mulf %5, %132 : vector<8x128xf32>
    %134 = arith.addf %130, %133 : vector<8x128xf32>
    %c3_74 = arith.constant 3 : index
    %c3_75 = arith.constant 3 : index
    %135 = memref.load %arg1[%c3_74, %c3_75] : memref<6x8xf32, #tpu.memory_space<smem>>
    %136 = vector.broadcast %135 : f32 to vector<8x128xf32>
    %137 = arith.mulf %7, %136 : vector<8x128xf32>
    %138 = arith.addf %134, %137 : vector<8x128xf32>
    %c3_76 = arith.constant 3 : index
    %c4_77 = arith.constant 4 : index
    %139 = memref.load %arg1[%c3_76, %c4_77] : memref<6x8xf32, #tpu.memory_space<smem>>
    %140 = vector.broadcast %139 : f32 to vector<8x128xf32>
    %141 = arith.mulf %9, %140 : vector<8x128xf32>
    %142 = arith.addf %138, %141 : vector<8x128xf32>
    %c3_78 = arith.constant 3 : index
    %c5_79 = arith.constant 5 : index
    %143 = memref.load %arg1[%c3_78, %c5_79] : memref<6x8xf32, #tpu.memory_space<smem>>
    %144 = vector.broadcast %143 : f32 to vector<8x128xf32>
    %145 = arith.mulf %11, %144 : vector<8x128xf32>
    %146 = arith.addf %142, %145 : vector<8x128xf32>
    %c3_80 = arith.constant 3 : index
    %c6_81 = arith.constant 6 : index
    %147 = memref.load %arg1[%c3_80, %c6_81] : memref<6x8xf32, #tpu.memory_space<smem>>
    %148 = vector.broadcast %147 : f32 to vector<8x128xf32>
    %149 = arith.mulf %13, %148 : vector<8x128xf32>
    %150 = arith.addf %146, %149 : vector<8x128xf32>
    %c3_82 = arith.constant 3 : index
    %c7_83 = arith.constant 7 : index
    %151 = memref.load %arg1[%c3_82, %c7_83] : memref<6x8xf32, #tpu.memory_space<smem>>
    %152 = vector.broadcast %151 : f32 to vector<8x128xf32>
    %153 = arith.mulf %15, %152 : vector<8x128xf32>
    %154 = arith.addf %150, %153 : vector<8x128xf32>
    %155 = math.tanh %154 : vector<8x128xf32>
    %c4_84 = arith.constant 4 : index
    %c0_85 = arith.constant 0 : index
    %156 = memref.load %arg1[%c4_84, %c0_85] : memref<6x8xf32, #tpu.memory_space<smem>>
    %157 = vector.broadcast %156 : f32 to vector<8x128xf32>
    %158 = arith.mulf %1, %157 : vector<8x128xf32>
    %c4_86 = arith.constant 4 : index
    %159 = memref.load %arg2[%c4_86] : memref<6xf32, #tpu.memory_space<smem>>
    %160 = vector.broadcast %159 : f32 to vector<8x128xf32>
    %161 = arith.addf %158, %160 : vector<8x128xf32>
    %c4_87 = arith.constant 4 : index
    %c1_88 = arith.constant 1 : index
    %162 = memref.load %arg1[%c4_87, %c1_88] : memref<6x8xf32, #tpu.memory_space<smem>>
    %163 = vector.broadcast %162 : f32 to vector<8x128xf32>
    %164 = arith.mulf %3, %163 : vector<8x128xf32>
    %165 = arith.addf %161, %164 : vector<8x128xf32>
    %c4_89 = arith.constant 4 : index
    %c2_90 = arith.constant 2 : index
    %166 = memref.load %arg1[%c4_89, %c2_90] : memref<6x8xf32, #tpu.memory_space<smem>>
    %167 = vector.broadcast %166 : f32 to vector<8x128xf32>
    %168 = arith.mulf %5, %167 : vector<8x128xf32>
    %169 = arith.addf %165, %168 : vector<8x128xf32>
    %c4_91 = arith.constant 4 : index
    %c3_92 = arith.constant 3 : index
    %170 = memref.load %arg1[%c4_91, %c3_92] : memref<6x8xf32, #tpu.memory_space<smem>>
    %171 = vector.broadcast %170 : f32 to vector<8x128xf32>
    %172 = arith.mulf %7, %171 : vector<8x128xf32>
    %173 = arith.addf %169, %172 : vector<8x128xf32>
    %c4_93 = arith.constant 4 : index
    %c4_94 = arith.constant 4 : index
    %174 = memref.load %arg1[%c4_93, %c4_94] : memref<6x8xf32, #tpu.memory_space<smem>>
    %175 = vector.broadcast %174 : f32 to vector<8x128xf32>
    %176 = arith.mulf %9, %175 : vector<8x128xf32>
    %177 = arith.addf %173, %176 : vector<8x128xf32>
    %c4_95 = arith.constant 4 : index
    %c5_96 = arith.constant 5 : index
    %178 = memref.load %arg1[%c4_95, %c5_96] : memref<6x8xf32, #tpu.memory_space<smem>>
    %179 = vector.broadcast %178 : f32 to vector<8x128xf32>
    %180 = arith.mulf %11, %179 : vector<8x128xf32>
    %181 = arith.addf %177, %180 : vector<8x128xf32>
    %c4_97 = arith.constant 4 : index
    %c6_98 = arith.constant 6 : index
    %182 = memref.load %arg1[%c4_97, %c6_98] : memref<6x8xf32, #tpu.memory_space<smem>>
    %183 = vector.broadcast %182 : f32 to vector<8x128xf32>
    %184 = arith.mulf %13, %183 : vector<8x128xf32>
    %185 = arith.addf %181, %184 : vector<8x128xf32>
    %c4_99 = arith.constant 4 : index
    %c7_100 = arith.constant 7 : index
    %186 = memref.load %arg1[%c4_99, %c7_100] : memref<6x8xf32, #tpu.memory_space<smem>>
    %187 = vector.broadcast %186 : f32 to vector<8x128xf32>
    %188 = arith.mulf %15, %187 : vector<8x128xf32>
    %189 = arith.addf %185, %188 : vector<8x128xf32>
    %190 = math.tanh %189 : vector<8x128xf32>
    %c5_101 = arith.constant 5 : index
    %c0_102 = arith.constant 0 : index
    %191 = memref.load %arg1[%c5_101, %c0_102] : memref<6x8xf32, #tpu.memory_space<smem>>
    %192 = vector.broadcast %191 : f32 to vector<8x128xf32>
    %193 = arith.mulf %1, %192 : vector<8x128xf32>
    %c5_103 = arith.constant 5 : index
    %194 = memref.load %arg2[%c5_103] : memref<6xf32, #tpu.memory_space<smem>>
    %195 = vector.broadcast %194 : f32 to vector<8x128xf32>
    %196 = arith.addf %193, %195 : vector<8x128xf32>
    %c5_104 = arith.constant 5 : index
    %c1_105 = arith.constant 1 : index
    %197 = memref.load %arg1[%c5_104, %c1_105] : memref<6x8xf32, #tpu.memory_space<smem>>
    %198 = vector.broadcast %197 : f32 to vector<8x128xf32>
    %199 = arith.mulf %3, %198 : vector<8x128xf32>
    %200 = arith.addf %196, %199 : vector<8x128xf32>
    %c5_106 = arith.constant 5 : index
    %c2_107 = arith.constant 2 : index
    %201 = memref.load %arg1[%c5_106, %c2_107] : memref<6x8xf32, #tpu.memory_space<smem>>
    %202 = vector.broadcast %201 : f32 to vector<8x128xf32>
    %203 = arith.mulf %5, %202 : vector<8x128xf32>
    %204 = arith.addf %200, %203 : vector<8x128xf32>
    %c5_108 = arith.constant 5 : index
    %c3_109 = arith.constant 3 : index
    %205 = memref.load %arg1[%c5_108, %c3_109] : memref<6x8xf32, #tpu.memory_space<smem>>
    %206 = vector.broadcast %205 : f32 to vector<8x128xf32>
    %207 = arith.mulf %7, %206 : vector<8x128xf32>
    %208 = arith.addf %204, %207 : vector<8x128xf32>
    %c5_110 = arith.constant 5 : index
    %c4_111 = arith.constant 4 : index
    %209 = memref.load %arg1[%c5_110, %c4_111] : memref<6x8xf32, #tpu.memory_space<smem>>
    %210 = vector.broadcast %209 : f32 to vector<8x128xf32>
    %211 = arith.mulf %9, %210 : vector<8x128xf32>
    %212 = arith.addf %208, %211 : vector<8x128xf32>
    %c5_112 = arith.constant 5 : index
    %c5_113 = arith.constant 5 : index
    %213 = memref.load %arg1[%c5_112, %c5_113] : memref<6x8xf32, #tpu.memory_space<smem>>
    %214 = vector.broadcast %213 : f32 to vector<8x128xf32>
    %215 = arith.mulf %11, %214 : vector<8x128xf32>
    %216 = arith.addf %212, %215 : vector<8x128xf32>
    %c5_114 = arith.constant 5 : index
    %c6_115 = arith.constant 6 : index
    %217 = memref.load %arg1[%c5_114, %c6_115] : memref<6x8xf32, #tpu.memory_space<smem>>
    %218 = vector.broadcast %217 : f32 to vector<8x128xf32>
    %219 = arith.mulf %13, %218 : vector<8x128xf32>
    %220 = arith.addf %216, %219 : vector<8x128xf32>
    %c5_116 = arith.constant 5 : index
    %c7_117 = arith.constant 7 : index
    %221 = memref.load %arg1[%c5_116, %c7_117] : memref<6x8xf32, #tpu.memory_space<smem>>
    %222 = vector.broadcast %221 : f32 to vector<8x128xf32>
    %223 = arith.mulf %15, %222 : vector<8x128xf32>
    %224 = arith.addf %220, %223 : vector<8x128xf32>
    %225 = math.tanh %224 : vector<8x128xf32>
    %c0_118 = arith.constant 0 : index
    %c0_119 = arith.constant 0 : index
    %226 = memref.load %arg3[%c0_118, %c0_119] : memref<4x6xf32, #tpu.memory_space<smem>>
    %227 = vector.broadcast %226 : f32 to vector<8x128xf32>
    %228 = arith.mulf %50, %227 : vector<8x128xf32>
    %c0_120 = arith.constant 0 : index
    %229 = memref.load %arg4[%c0_120] : memref<4xf32, #tpu.memory_space<smem>>
    %230 = vector.broadcast %229 : f32 to vector<8x128xf32>
    %231 = arith.addf %228, %230 : vector<8x128xf32>
    %c0_121 = arith.constant 0 : index
    %c1_122 = arith.constant 1 : index
    %232 = memref.load %arg3[%c0_121, %c1_122] : memref<4x6xf32, #tpu.memory_space<smem>>
    %233 = vector.broadcast %232 : f32 to vector<8x128xf32>
    %234 = arith.mulf %85, %233 : vector<8x128xf32>
    %235 = arith.addf %231, %234 : vector<8x128xf32>
    %c0_123 = arith.constant 0 : index
    %c2_124 = arith.constant 2 : index
    %236 = memref.load %arg3[%c0_123, %c2_124] : memref<4x6xf32, #tpu.memory_space<smem>>
    %237 = vector.broadcast %236 : f32 to vector<8x128xf32>
    %238 = arith.mulf %120, %237 : vector<8x128xf32>
    %239 = arith.addf %235, %238 : vector<8x128xf32>
    %c0_125 = arith.constant 0 : index
    %c3_126 = arith.constant 3 : index
    %240 = memref.load %arg3[%c0_125, %c3_126] : memref<4x6xf32, #tpu.memory_space<smem>>
    %241 = vector.broadcast %240 : f32 to vector<8x128xf32>
    %242 = arith.mulf %155, %241 : vector<8x128xf32>
    %243 = arith.addf %239, %242 : vector<8x128xf32>
    %c0_127 = arith.constant 0 : index
    %c4_128 = arith.constant 4 : index
    %244 = memref.load %arg3[%c0_127, %c4_128] : memref<4x6xf32, #tpu.memory_space<smem>>
    %245 = vector.broadcast %244 : f32 to vector<8x128xf32>
    %246 = arith.mulf %190, %245 : vector<8x128xf32>
    %247 = arith.addf %243, %246 : vector<8x128xf32>
    %c0_129 = arith.constant 0 : index
    %c5_130 = arith.constant 5 : index
    %248 = memref.load %arg3[%c0_129, %c5_130] : memref<4x6xf32, #tpu.memory_space<smem>>
    %249 = vector.broadcast %248 : f32 to vector<8x128xf32>
    %250 = arith.mulf %225, %249 : vector<8x128xf32>
    %251 = arith.addf %247, %250 : vector<8x128xf32>
    %252 = math.tanh %251 : vector<8x128xf32>
    %c1_131 = arith.constant 1 : index
    %c0_132 = arith.constant 0 : index
    %253 = memref.load %arg3[%c1_131, %c0_132] : memref<4x6xf32, #tpu.memory_space<smem>>
    %254 = vector.broadcast %253 : f32 to vector<8x128xf32>
    %255 = arith.mulf %50, %254 : vector<8x128xf32>
    %c1_133 = arith.constant 1 : index
    %256 = memref.load %arg4[%c1_133] : memref<4xf32, #tpu.memory_space<smem>>
    %257 = vector.broadcast %256 : f32 to vector<8x128xf32>
    %258 = arith.addf %255, %257 : vector<8x128xf32>
    %c1_134 = arith.constant 1 : index
    %c1_135 = arith.constant 1 : index
    %259 = memref.load %arg3[%c1_134, %c1_135] : memref<4x6xf32, #tpu.memory_space<smem>>
    %260 = vector.broadcast %259 : f32 to vector<8x128xf32>
    %261 = arith.mulf %85, %260 : vector<8x128xf32>
    %262 = arith.addf %258, %261 : vector<8x128xf32>
    %c1_136 = arith.constant 1 : index
    %c2_137 = arith.constant 2 : index
    %263 = memref.load %arg3[%c1_136, %c2_137] : memref<4x6xf32, #tpu.memory_space<smem>>
    %264 = vector.broadcast %263 : f32 to vector<8x128xf32>
    %265 = arith.mulf %120, %264 : vector<8x128xf32>
    %266 = arith.addf %262, %265 : vector<8x128xf32>
    %c1_138 = arith.constant 1 : index
    %c3_139 = arith.constant 3 : index
    %267 = memref.load %arg3[%c1_138, %c3_139] : memref<4x6xf32, #tpu.memory_space<smem>>
    %268 = vector.broadcast %267 : f32 to vector<8x128xf32>
    %269 = arith.mulf %155, %268 : vector<8x128xf32>
    %270 = arith.addf %266, %269 : vector<8x128xf32>
    %c1_140 = arith.constant 1 : index
    %c4_141 = arith.constant 4 : index
    %271 = memref.load %arg3[%c1_140, %c4_141] : memref<4x6xf32, #tpu.memory_space<smem>>
    %272 = vector.broadcast %271 : f32 to vector<8x128xf32>
    %273 = arith.mulf %190, %272 : vector<8x128xf32>
    %274 = arith.addf %270, %273 : vector<8x128xf32>
    %c1_142 = arith.constant 1 : index
    %c5_143 = arith.constant 5 : index
    %275 = memref.load %arg3[%c1_142, %c5_143] : memref<4x6xf32, #tpu.memory_space<smem>>
    %276 = vector.broadcast %275 : f32 to vector<8x128xf32>
    %277 = arith.mulf %225, %276 : vector<8x128xf32>
    %278 = arith.addf %274, %277 : vector<8x128xf32>
    %279 = math.tanh %278 : vector<8x128xf32>
    %c2_144 = arith.constant 2 : index
    %c0_145 = arith.constant 0 : index
    %280 = memref.load %arg3[%c2_144, %c0_145] : memref<4x6xf32, #tpu.memory_space<smem>>
    %281 = vector.broadcast %280 : f32 to vector<8x128xf32>
    %282 = arith.mulf %50, %281 : vector<8x128xf32>
    %c2_146 = arith.constant 2 : index
    %283 = memref.load %arg4[%c2_146] : memref<4xf32, #tpu.memory_space<smem>>
    %284 = vector.broadcast %283 : f32 to vector<8x128xf32>
    %285 = arith.addf %282, %284 : vector<8x128xf32>
    %c2_147 = arith.constant 2 : index
    %c1_148 = arith.constant 1 : index
    %286 = memref.load %arg3[%c2_147, %c1_148] : memref<4x6xf32, #tpu.memory_space<smem>>
    %287 = vector.broadcast %286 : f32 to vector<8x128xf32>
    %288 = arith.mulf %85, %287 : vector<8x128xf32>
    %289 = arith.addf %285, %288 : vector<8x128xf32>
    %c2_149 = arith.constant 2 : index
    %c2_150 = arith.constant 2 : index
    %290 = memref.load %arg3[%c2_149, %c2_150] : memref<4x6xf32, #tpu.memory_space<smem>>
    %291 = vector.broadcast %290 : f32 to vector<8x128xf32>
    %292 = arith.mulf %120, %291 : vector<8x128xf32>
    %293 = arith.addf %289, %292 : vector<8x128xf32>
    %c2_151 = arith.constant 2 : index
    %c3_152 = arith.constant 3 : index
    %294 = memref.load %arg3[%c2_151, %c3_152] : memref<4x6xf32, #tpu.memory_space<smem>>
    %295 = vector.broadcast %294 : f32 to vector<8x128xf32>
    %296 = arith.mulf %155, %295 : vector<8x128xf32>
    %297 = arith.addf %293, %296 : vector<8x128xf32>
    %c2_153 = arith.constant 2 : index
    %c4_154 = arith.constant 4 : index
    %298 = memref.load %arg3[%c2_153, %c4_154] : memref<4x6xf32, #tpu.memory_space<smem>>
    %299 = vector.broadcast %298 : f32 to vector<8x128xf32>
    %300 = arith.mulf %190, %299 : vector<8x128xf32>
    %301 = arith.addf %297, %300 : vector<8x128xf32>
    %c2_155 = arith.constant 2 : index
    %c5_156 = arith.constant 5 : index
    %302 = memref.load %arg3[%c2_155, %c5_156] : memref<4x6xf32, #tpu.memory_space<smem>>
    %303 = vector.broadcast %302 : f32 to vector<8x128xf32>
    %304 = arith.mulf %225, %303 : vector<8x128xf32>
    %305 = arith.addf %301, %304 : vector<8x128xf32>
    %306 = math.tanh %305 : vector<8x128xf32>
    %c3_157 = arith.constant 3 : index
    %c0_158 = arith.constant 0 : index
    %307 = memref.load %arg3[%c3_157, %c0_158] : memref<4x6xf32, #tpu.memory_space<smem>>
    %308 = vector.broadcast %307 : f32 to vector<8x128xf32>
    %309 = arith.mulf %50, %308 : vector<8x128xf32>
    %c3_159 = arith.constant 3 : index
    %310 = memref.load %arg4[%c3_159] : memref<4xf32, #tpu.memory_space<smem>>
    %311 = vector.broadcast %310 : f32 to vector<8x128xf32>
    %312 = arith.addf %309, %311 : vector<8x128xf32>
    %c3_160 = arith.constant 3 : index
    %c1_161 = arith.constant 1 : index
    %313 = memref.load %arg3[%c3_160, %c1_161] : memref<4x6xf32, #tpu.memory_space<smem>>
    %314 = vector.broadcast %313 : f32 to vector<8x128xf32>
    %315 = arith.mulf %85, %314 : vector<8x128xf32>
    %316 = arith.addf %312, %315 : vector<8x128xf32>
    %c3_162 = arith.constant 3 : index
    %c2_163 = arith.constant 2 : index
    %317 = memref.load %arg3[%c3_162, %c2_163] : memref<4x6xf32, #tpu.memory_space<smem>>
    %318 = vector.broadcast %317 : f32 to vector<8x128xf32>
    %319 = arith.mulf %120, %318 : vector<8x128xf32>
    %320 = arith.addf %316, %319 : vector<8x128xf32>
    %c3_164 = arith.constant 3 : index
    %c3_165 = arith.constant 3 : index
    %321 = memref.load %arg3[%c3_164, %c3_165] : memref<4x6xf32, #tpu.memory_space<smem>>
    %322 = vector.broadcast %321 : f32 to vector<8x128xf32>
    %323 = arith.mulf %155, %322 : vector<8x128xf32>
    %324 = arith.addf %320, %323 : vector<8x128xf32>
    %c3_166 = arith.constant 3 : index
    %c4_167 = arith.constant 4 : index
    %325 = memref.load %arg3[%c3_166, %c4_167] : memref<4x6xf32, #tpu.memory_space<smem>>
    %326 = vector.broadcast %325 : f32 to vector<8x128xf32>
    %327 = arith.mulf %190, %326 : vector<8x128xf32>
    %328 = arith.addf %324, %327 : vector<8x128xf32>
    %c3_168 = arith.constant 3 : index
    %c5_169 = arith.constant 5 : index
    %329 = memref.load %arg3[%c3_168, %c5_169] : memref<4x6xf32, #tpu.memory_space<smem>>
    %330 = vector.broadcast %329 : f32 to vector<8x128xf32>
    %331 = arith.mulf %225, %330 : vector<8x128xf32>
    %332 = arith.addf %328, %331 : vector<8x128xf32>
    %333 = math.tanh %332 : vector<8x128xf32>
    %c0_170 = arith.constant 0 : index
    %c0_171 = arith.constant 0 : index
    %334 = memref.load %arg5[%c0_170, %c0_171] : memref<1x4xf32, #tpu.memory_space<smem>>
    %335 = vector.broadcast %334 : f32 to vector<8x128xf32>
    %336 = arith.mulf %252, %335 : vector<8x128xf32>
    %c0_172 = arith.constant 0 : index
    %337 = memref.load %arg6[%c0_172] : memref<1xf32, #tpu.memory_space<smem>>
    %338 = vector.broadcast %337 : f32 to vector<8x128xf32>
    %339 = arith.addf %336, %338 : vector<8x128xf32>
    %c0_173 = arith.constant 0 : index
    %c1_174 = arith.constant 1 : index
    %340 = memref.load %arg5[%c0_173, %c1_174] : memref<1x4xf32, #tpu.memory_space<smem>>
    %341 = vector.broadcast %340 : f32 to vector<8x128xf32>
    %342 = arith.mulf %279, %341 : vector<8x128xf32>
    %343 = arith.addf %339, %342 : vector<8x128xf32>
    %c0_175 = arith.constant 0 : index
    %c2_176 = arith.constant 2 : index
    %344 = memref.load %arg5[%c0_175, %c2_176] : memref<1x4xf32, #tpu.memory_space<smem>>
    %345 = vector.broadcast %344 : f32 to vector<8x128xf32>
    %346 = arith.mulf %306, %345 : vector<8x128xf32>
    %347 = arith.addf %343, %346 : vector<8x128xf32>
    %c0_177 = arith.constant 0 : index
    %c3_178 = arith.constant 3 : index
    %348 = memref.load %arg5[%c0_177, %c3_178] : memref<1x4xf32, #tpu.memory_space<smem>>
    %349 = vector.broadcast %348 : f32 to vector<8x128xf32>
    %350 = arith.mulf %333, %349 : vector<8x128xf32>
    %351 = arith.addf %347, %350 : vector<8x128xf32>
    %352 = math.tanh %351 : vector<8x128xf32>
    %cst = arith.constant 5.000000e-01 : f32
    %353 = vector.broadcast %cst : f32 to vector<8x128xf32>
    %354 = arith.mulf %353, %352 : vector<8x128xf32>
    %cst_179 = arith.constant 5.000000e-01 : f32
    %355 = vector.broadcast %cst_179 : f32 to vector<8x128xf32>
    %356 = arith.addf %354, %355 : vector<8x128xf32>
    %c0_180 = arith.constant 0 : index
    %c0_181 = arith.constant 0 : index
    %357 = vector.load %arg8[%c0_180, %c0_181] : memref<8x128xf32, #tpu.memory_space<vmem>>, vector<8x128xf32>
    tpu.vector_store %arg8[%c0_180, %c0_181], %356 {strides = array<i32>} : memref<8x128xf32, #tpu.memory_space<vmem>>, vector<8x128xf32>,
    return
  }
  func.func @transform_0(%arg0: i32) -> (i32, i32) {
    %c0_i32 = arith.constant 0 : i32
    %c0_i32_0 = arith.constant 0 : i32
    %c0_i32_1 = arith.constant 0 : i32
    return %c0_i32, %c0_i32_0 : i32, i32
  }
  func.func @transform_1(%arg0: i32) -> i32 {
    %c0_i32 = arith.constant 0 : i32
    %c0_i32_0 = arith.constant 0 : i32
    return %c0_i32 : i32
  }
  func.func @transform_2(%arg0: i32) -> (i32, i32) {
    %c0_i32 = arith.constant 0 : i32
    %c0_i32_0 = arith.constant 0 : i32
    %c0_i32_1 = arith.constant 0 : i32
    return %c0_i32, %c0_i32_0 : i32, i32
  }
  func.func @transform_3(%arg0: i32) -> i32 {
    %c0_i32 = arith.constant 0 : i32
    %c0_i32_0 = arith.constant 0 : i32
    return %c0_i32 : i32
  }
  func.func @transform_4(%arg0: i32) -> (i32, i32) {
    %c0_i32 = arith.constant 0 : i32
    %c0_i32_0 = arith.constant 0 : i32
    %c0_i32_1 = arith.constant 0 : i32
    return %c0_i32, %c0_i32_0 : i32, i32
  }
  func.func @transform_5(%arg0: i32) -> i32 {
    %c0_i32 = arith.constant 0 : i32
    %c0_i32_0 = arith.constant 0 : i32
    return %c0_i32 : i32
  }
  func.func @transform_6(%arg0: i32) -> (i32, i32, i32) {
    %c0_i32 = arith.constant 0 : i32
    %c0_i32_0 = arith.constant 0 : i32
    %c0_i32_1 = arith.constant 0 : i32
    return %c0_i32, %arg0, %c0_i32_0 : i32, i32, i32
  }
  func.func @transform_7(%arg0: i32) -> (i32, i32) {
    %c0_i32 = arith.constant 0 : i32
    %c0_i32_0 = arith.constant 0 : i32
    return %arg0, %c0_i32 : i32, i32
  }
}

</mosaic_0001>

<llo_original>
// kernel: tpu_custom_call.1
$region0: #{tpu_custom_call.1}
  #allocation0 [shape = 'u32[]', space=smem, size = 0x4, offset = 0x4, fixed_abs, tag = 'smem constant byte address 0x4 - core index']
  #allocation1 [shape = 'u32[144,128]{1,0:T(1,128)}', space=vmem, size = 0x12000, scoped, tag = 'internal scratch']
  #allocation2 [shape = 'f32[1]{0:T(128)S(6)}', space=smem, size = 0x200, scoped, tag = 'scoped memory for tpu_custom_call.1']
  %s0 = inlined_call_operand.hbm [shape: f32[6,8], index: 0, kind: input, shape index: {}]
  %s1 = inlined_call_operand.vmem [shape: f32[6], index: 1, kind: input, shape index: {}]
  %s2 = inlined_call_operand.vmem [shape: f32[4,6], index: 2, kind: input, shape index: {}]
  %s3 = inlined_call_operand.vmem [shape: f32[4], index: 3, kind: input, shape index: {}]
  %s4 = inlined_call_operand.vmem [shape: f32[1,4], index: 4, kind: input, shape index: {}]
  %s5 = inlined_call_operand.<no memory space> [shape: f32[1], index: 5, kind: input, shape index: {}]
  %s6 = inlined_call_operand.hbm [shape: f32[8,8,128], index: 6, kind: input, shape index: {}]
  %s7 = inlined_call_operand.hbm [shape: f32[8,128], index: 7, kind: output, shape index: {}]
  %s8 = sld [smem:[#allocation0]]
  $region62: #{tpu_custom_call.1} parent=0
    _
  %s10 = ssub.s32 1, %s8
  %s11 = scalar_select 0, %s10, %s8
  %12 = sst [smem:[#allocation2]] %s5
  $region1: #{tpu_custom_call.1} parent=0
    #allocation3 [shape = 'u8[4096]{0}', space=smem, size = 0x1000, scoped, tag = 'input window, operand 0, single buffered']
    #allocation4 [shape = 's32[1]{0}', space=sflag, size = 0x4, scoped, tag = 'scoped memory for tpu_custom_call.1']
    #allocation5 [shape = 's32[1]{0}', space=sflag, size = 0x4, scoped, tag = 'scoped memory for tpu_custom_call.1']
    #allocation6 [shape = 's32[1]{0}', space=sflag, size = 0x4, scoped, tag = 'scoped memory for tpu_custom_call.1']
    #allocation7 [shape = 's32[1]{0}', space=sflag, size = 0x4, scoped, tag = 'scoped memory for tpu_custom_call.1']
    #allocation8 [shape = 'u8[512]{0}', space=smem, size = 0x200, scoped, tag = 'input window, operand 1, single buffered']
    #allocation9 [shape = 'u8[2048]{0}', space=smem, size = 0x800, scoped, tag = 'input window, operand 2, single buffered']
    #allocation10 [shape = 's32[1]{0}', space=sflag, size = 0x4, scoped, tag = 'scoped memory for tpu_custom_call.1']
    #allocation11 [shape = 'u8[512]{0}', space=smem, size = 0x200, scoped, tag = 'input window, operand 3, single buffered']
    #allocation12 [shape = 'u8[512]{0}', space=smem, size = 0x200, scoped, tag = 'input window, operand 4, single buffered']
    #allocation13 [shape = 's32[1]{0}', space=sflag, size = 0x4, scoped, tag = 'scoped memory for tpu_custom_call.1']
    #allocation14 [shape = 'u8[32768]{0}', space=vmem, size = 0x8000, scoped, tag = 'input window, operand 6, single buffered']
    #allocation15 [shape = 'u8[4096]{0}', space=vmem, size = 0x1000, scoped, tag = 'output window, operand 0, single buffered']
    %13 = vsyncpa [#allocation6], 0
    %14 = vsyncpa [#allocation7], 0
    %15 = vsyncpa [#allocation10], 0
    %16 = vsyncpa [#allocation13], 0
    %17 = vsyncpa [#allocation4], 0
    %18 = vsyncpa [#allocation5], 0
    // Predicated region
    $region2: #{tpu_custom_call.1} parent=1 // pred_check
      _
    $region3: #{tpu_custom_call.1} parent=1 // pred_check_branch
      %20 = sbr.rel (0) target = $region5
    $region4: #{tpu_custom_call.1} parent=1 // pred_region
      %s22 = ssub.s32 128, 128
      %23 = vsyncadd [#allocation6], %s22
      %26 = dma.hbm_to_smem %s0, 128, [#allocation3], [#allocation6]
    $region5: #{tpu_custom_call.1} parent=1 // pred_fallthru
      _
    // Predicated region
    $region6: #{tpu_custom_call.1} parent=1 // pred_check
      _
    $region7: #{tpu_custom_call.1} parent=1 // pred_check_branch
      %28 = sbr.rel (0) target = $region9
    $region8: #{tpu_custom_call.1} parent=1 // pred_region
      %s30 = ssub.s32 16, 16
      %31 = vsyncadd [#allocation7], %s30
      %s33 = sshll.u32 %s1, 4
      %s34 = int_to_ptr.vmem [resolvable:$true] %s33
      %36 = dma.vmem_to_smem %s34, 16, [#allocation8], [#allocation7]
    $region9: #{tpu_custom_call.1} parent=1 // pred_fallthru
      _
    // Predicated region
    $region10: #{tpu_custom_call.1} parent=1 // pred_check
      _
    $region11: #{tpu_custom_call.1} parent=1 // pred_check_branch
      %38 = sbr.rel (0) target = $region13
    $region12: #{tpu_custom_call.1} parent=1 // pred_region
      %s40 = ssub.s32 64, 64
      %41 = vsyncadd [#allocation10], %s40
      %s43 = sshll.u32 %s2, 4
      %s44 = int_to_ptr.vmem [resolvable:$true] %s43
      %46 = dma.vmem_to_smem %s44, 64, [#allocation9], [#allocation10]
    $region13: #{tpu_custom_call.1} parent=1 // pred_fallthru
      _
    // Predicated region
    $region14: #{tpu_custom_call.1} parent=1 // pred_check
      _
    $region15: #{tpu_custom_call.1} parent=1 // pred_check_branch
      %48 = sbr.rel (0) target = $region17
    $region16: #{tpu_custom_call.1} parent=1 // pred_region
      %s50 = ssub.s32 16, 16
      %51 = vsyncadd [#allocation10], %s50
      %s53 = sshll.u32 %s3, 4
      %s54 = int_to_ptr.vmem [resolvable:$true] %s53
      %56 = dma.vmem_to_smem %s54, 16, [#allocation11], [#allocation10]
    $region17: #{tpu_custom_call.1} parent=1 // pred_fallthru
      _
    // Predicated region
    $region18: #{tpu_custom_call.1} parent=1 // pred_check
      _
    $region19: #{tpu_custom_call.1} parent=1 // pred_check_branch
      %58 = sbr.rel (0) target = $region21
    $region20: #{tpu_custom_call.1} parent=1 // pred_region
      %s60 = ssub.s32 16, 16
      %61 = vsyncadd [#allocation13], %s60
      %s63 = sshll.u32 %s4, 4
      %s64 = int_to_ptr.vmem [resolvable:$true] %s63
      %66 = dma.vmem_to_smem %s64, 16, [#allocation12], [#allocation13]
    $region21: #{tpu_custom_call.1} parent=1 // pred_fallthru
      _
    // Predicated region
    $region22: #{tpu_custom_call.1} parent=1 // pred_check
      _
    $region23: #{tpu_custom_call.1} parent=1 // pred_check_branch
      %68 = sbr.rel (0) target = $region25
    $region24: #{tpu_custom_call.1} parent=1 // pred_region
      _
    $region25: #{tpu_custom_call.1} parent=1 // pred_fallthru
      _
    // Predicated region
    $region26: #{tpu_custom_call.1} parent=1 // pred_check
      _
    $region27: #{tpu_custom_call.1} parent=1 // pred_check_branch
      %70 = sbr.rel (0) target = $region29
    $region28: #{tpu_custom_call.1} parent=1 // pred_region
      %s72 = ssub.s32 1024, 1024
      %73 = vsyncadd [#allocation4], %s72
      %s74 = sshll.u32 [#allocation14], 4
      %s75 = int_to_ptr.vmem [resolvable:$true] %s74
      %80 = dma.hbm_to_vmem [thread:$0]  %s6, 1024, %s75, [#allocation4], 128, 128, 8
    $region29: #{tpu_custom_call.1} parent=1 // pred_fallthru
      _
    // Predicated region
    $region30: #{tpu_custom_call.1} parent=1 // pred_check
      _
    $region31: #{tpu_custom_call.1} parent=1 // pred_check_branch
      %82 = sbr.rel (0) target = $region33
    $region32: #{tpu_custom_call.1} parent=1 // pred_region
      %83 = dma.done [#allocation6], 128
    $region33: #{tpu_custom_call.1} parent=1 // pred_fallthru
      _
    // Predicated region
    $region34: #{tpu_custom_call.1} parent=1 // pred_check
      _
    $region35: #{tpu_custom_call.1} parent=1 // pred_check_branch
      %85 = sbr.rel (0) target = $region37
    $region36: #{tpu_custom_call.1} parent=1 // pred_region
      %86 = dma.done [#allocation7], 16
    $region37: #{tpu_custom_call.1} parent=1 // pred_fallthru
      _
    // Predicated region
    $region38: #{tpu_custom_call.1} parent=1 // pred_check
      _
    $region39: #{tpu_custom_call.1} parent=1 // pred_check_branch
      %88 = sbr.rel (0) target = $region41
    $region40: #{tpu_custom_call.1} parent=1 // pred_region
      %89 = dma.done [#allocation10], 64
    $region41: #{tpu_custom_call.1} parent=1 // pred_fallthru
      _
    // Predicated region
    $region42: #{tpu_custom_call.1} parent=1 // pred_check
      _
    $region43: #{tpu_custom_call.1} parent=1 // pred_check_branch
      %91 = sbr.rel (0) target = $region45
    $region44: #{tpu_custom_call.1} parent=1 // pred_region
      %92 = dma.done [#allocation10], 16
    $region45: #{tpu_custom_call.1} parent=1 // pred_fallthru
      _
    // Predicated region
    $region46: #{tpu_custom_call.1} parent=1 // pred_check
      _
    $region47: #{tpu_custom_call.1} parent=1 // pred_check_branch
      %94 = sbr.rel (0) target = $region49
    $region48: #{tpu_custom_call.1} parent=1 // pred_region
      %95 = dma.done [#allocation13], 16
    $region49: #{tpu_custom_call.1} parent=1 // pred_fallthru
      _
    // Predicated region
    $region50: #{tpu_custom_call.1} parent=1 // pred_check
      _
    $region51: #{tpu_custom_call.1} parent=1 // pred_check_branch
      %97 = sbr.rel (0) target = $region53
    $region52: #{tpu_custom_call.1} parent=1 // pred_region
      %98 = dma.done [#allocation4], 1024
    $region53: #{tpu_custom_call.1} parent=1 // pred_fallthru
      _
    %99 = sfence
    %v100 = vld [vmem:[#allocation14] sm:$0xff]
    %s101 = scalar_lea.vmem [#allocation14], 8
    %v102 = vld [vmem:[%s101] sm:$0xff]
    %s103 = scalar_lea.vmem [#allocation14], 16
    %v104 = vld [vmem:[%s103] sm:$0xff]
    %s105 = scalar_lea.vmem [#allocation14], 24
    %v106 = vld [vmem:[%s105] sm:$0xff]
    %s107 = scalar_lea.vmem [#allocation14], 32
    %v108 = vld [vmem:[%s107] sm:$0xff]
    %s109 = scalar_lea.vmem [#allocation14], 40
    %v110 = vld [vmem:[%s109] sm:$0xff]
    %s111 = scalar_lea.vmem [#allocation14], 48
    %v112 = vld [vmem:[%s111] sm:$0xff]
    %s113 = scalar_lea.vmem [#allocation14], 56
    %v114 = vld [vmem:[%s113] sm:$0xff]
    %s115 = sld [smem:[#allocation3]]
    %v116 = vstv %s115
    %v117 = vmul.f32 %v100, %v116
    %s118 = sld [smem:[#allocation8]]
    %v119 = vstv %s118
    %v120 = vadd.f32 %v117, %v119
    %s121 = sld [smem:[#allocation3 + $0x1]]
    %v122 = vstv %s121
    %v123 = vmul.f32 %v102, %v122
    %v124 = vadd.f32 %v120, %v123
    %s125 = sld [smem:[#allocation3 + $0x2]]
    %v126 = vstv %s125
    %v127 = vmul.f32 %v104, %v126
    %v128 = vadd.f32 %v124, %v127
    %s129 = sld [smem:[#allocation3 + $0x3]]
    %v130 = vstv %s129
    %v131 = vmul.f32 %v106, %v130
    %v132 = vadd.f32 %v128, %v131
    %s133 = sld [smem:[#allocation3 + $0x4]]
    %v134 = vstv %s133
    %v135 = vmul.f32 %v108, %v134
    %v136 = vadd.f32 %v132, %v135
    %s137 = sld [smem:[#allocation3 + $0x5]]
    %v138 = vstv %s137
    %v139 = vmul.f32 %v110, %v138
    %v140 = vadd.f32 %v136, %v139
    %s141 = sld [smem:[#allocation3 + $0x6]]
    %v142 = vstv %s141
    %v143 = vmul.f32 %v112, %v142
    %v144 = vadd.f32 %v140, %v143
    %s145 = sld [smem:[#allocation3 + $0x7]]
    %v146 = vstv %s145
    %v147 = vmul.f32 %v114, %v146
    %v148 = vadd.f32 %v144, %v147
    %v149 = vtanh.pop %v148
    %s150 = sld [smem:[#allocation3 + $0x80]]
    %v151 = vstv %s150
    %v152 = vmul.f32 %v100, %v151
    %s153 = sld [smem:[#allocation8 + $0x1]]
    %v154 = vstv %s153
    %v155 = vadd.f32 %v152, %v154
    %s156 = sld [smem:[#allocation3 + $0x81]]
    %v157 = vstv %s156
    %v158 = vmul.f32 %v102, %v157
    %v159 = vadd.f32 %v155, %v158
    %s160 = sld [smem:[#allocation3 + $0x82]]
    %v161 = vstv %s160
    %v162 = vmul.f32 %v104, %v161
    %v163 = vadd.f32 %v159, %v162
    %s164 = sld [smem:[#allocation3 + $0x83]]
    %v165 = vstv %s164
    %v166 = vmul.f32 %v106, %v165
    %v167 = vadd.f32 %v163, %v166
    %s168 = sld [smem:[#allocation3 + $0x84]]
    %v169 = vstv %s168
    %v170 = vmul.f32 %v108, %v169
    %v171 = vadd.f32 %v167, %v170
    %s172 = sld [smem:[#allocation3 + $0x85]]
    %v173 = vstv %s172
    %v174 = vmul.f32 %v110, %v173
    %v175 = vadd.f32 %v171, %v174
    %s176 = sld [smem:[#allocation3 + $0x86]]
    %v177 = vstv %s176
    %v178 = vmul.f32 %v112, %v177
    %v179 = vadd.f32 %v175, %v178
    %s180 = sld [smem:[#allocation3 + $0x87]]
    %v181 = vstv %s180
    %v182 = vmul.f32 %v114, %v181
    %v183 = vadd.f32 %v179, %v182
    %v184 = vtanh.pop %v183
    %s185 = sld [smem:[#allocation3 + $0x100]]
    %v186 = vstv %s185
    %v187 = vmul.f32 %v100, %v186
    %s188 = sld [smem:[#allocation8 + $0x2]]
    %v189 = vstv %s188
    %v190 = vadd.f32 %v187, %v189
    %s191 = sld [smem:[#allocation3 + $0x101]]
    %v192 = vstv %s191
    %v193 = vmul.f32 %v102, %v192
    %v194 = vadd.f32 %v190, %v193
    %s195 = sld [smem:[#allocation3 + $0x102]]
    %v196 = vstv %s195
    %v197 = vmul.f32 %v104, %v196
    %v198 = vadd.f32 %v194, %v197
    %s199 = sld [smem:[#allocation3 + $0x103]]
    %v200 = vstv %s199
    %v201 = vmul.f32 %v106, %v200
    %v202 = vadd.f32 %v198, %v201
    %s203 = sld [smem:[#allocation3 + $0x104]]
    %v204 = vstv %s203
    %v205 = vmul.f32 %v108, %v204
    %v206 = vadd.f32 %v202, %v205
    %s207 = sld [smem:[#allocation3 + $0x105]]
    %v208 = vstv %s207
    %v209 = vmul.f32 %v110, %v208
    %v210 = vadd.f32 %v206, %v209
    %s211 = sld [smem:[#allocation3 + $0x106]]
    %v212 = vstv %s211
    %v213 = vmul.f32 %v112, %v212
    %v214 = vadd.f32 %v210, %v213
    %s215 = sld [smem:[#allocation3 + $0x107]]
    %v216 = vstv %s215
    %v217 = vmul.f32 %v114, %v216
    %v218 = vadd.f32 %v214, %v217
    %v219 = vtanh.pop %v218
    %s220 = sld [smem:[#allocation3 + $0x180]]
    %v221 = vstv %s220
    %v222 = vmul.f32 %v100, %v221
    %s223 = sld [smem:[#allocation8 + $0x3]]
    %v224 = vstv %s223
    %v225 = vadd.f32 %v222, %v224
    %s226 = sld [smem:[#allocation3 + $0x181]]
    %v227 = vstv %s226
    %v228 = vmul.f32 %v102, %v227
    %v229 = vadd.f32 %v225, %v228
    %s230 = sld [smem:[#allocation3 + $0x182]]
    %v231 = vstv %s230
    %v232 = vmul.f32 %v104, %v231
    %v233 = vadd.f32 %v229, %v232
    %s234 = sld [smem:[#allocation3 + $0x183]]
    %v235 = vstv %s234
    %v236 = vmul.f32 %v106, %v235
    %v237 = vadd.f32 %v233, %v236
    %s238 = sld [smem:[#allocation3 + $0x184]]
    %v239 = vstv %s238
    %v240 = vmul.f32 %v108, %v239
    %v241 = vadd.f32 %v237, %v240
    %s242 = sld [smem:[#allocation3 + $0x185]]
    %v243 = vstv %s242
    %v244 = vmul.f32 %v110, %v243
    %v245 = vadd.f32 %v241, %v244
    %s246 = sld [smem:[#allocation3 + $0x186]]
    %v247 = vstv %s246
    %v248 = vmul.f32 %v112, %v247
    %v249 = vadd.f32 %v245, %v248
    %s250 = sld [smem:[#allocation3 + $0x187]]
    %v251 = vstv %s250
    %v252 = vmul.f32 %v114, %v251
    %v253 = vadd.f32 %v249, %v252
    %v254 = vtanh.pop %v253
    %s255 = sld [smem:[#allocation3 + $0x200]]
    %v256 = vstv %s255
    %v257 = vmul.f32 %v100, %v256
    %s258 = sld [smem:[#allocation8 + $0x4]]
    %v259 = vstv %s258
    %v260 = vadd.f32 %v257, %v259
    %s261 = sld [smem:[#allocation3 + $0x201]]
    %v262 = vstv %s261
    %v263 = vmul.f32 %v102, %v262
    %v264 = vadd.f32 %v260, %v263
    %s265 = sld [smem:[#allocation3 + $0x202]]
    %v266 = vstv %s265
    %v267 = vmul.f32 %v104, %v266
    %v268 = vadd.f32 %v264, %v267
    %s269 = sld [smem:[#allocation3 + $0x203]]
    %v270 = vstv %s269
    %v271 = vmul.f32 %v106, %v270
    %v272 = vadd.f32 %v268, %v271
    %s273 = sld [smem:[#allocation3 + $0x204]]
    %v274 = vstv %s273
    %v275 = vmul.f32 %v108, %v274
    %v276 = vadd.f32 %v272, %v275
    %s277 = sld [smem:[#allocation3 + $0x205]]
    %v278 = vstv %s277
    %v279 = vmul.f32 %v110, %v278
    %v280 = vadd.f32 %v276, %v279
    %s281 = sld [smem:[#allocation3 + $0x206]]
    %v282 = vstv %s281
    %v283 = vmul.f32 %v112, %v282
    %v284 = vadd.f32 %v280, %v283
    %s285 = sld [smem:[#allocation3 + $0x207]]
    %v286 = vstv %s285
    %v287 = vmul.f32 %v114, %v286
    %v288 = vadd.f32 %v284, %v287
    %v289 = vtanh.pop %v288
    %s290 = sld [smem:[#allocation3 + $0x280]]
    %v291 = vstv %s290
    %v292 = vmul.f32 %v100, %v291
    %s293 = sld [smem:[#allocation8 + $0x5]]
    %v294 = vstv %s293
    %v295 = vadd.f32 %v292, %v294
    %s296 = sld [smem:[#allocation3 + $0x281]]
    %v297 = vstv %s296
    %v298 = vmul.f32 %v102, %v297
    %v299 = vadd.f32 %v295, %v298
    %s300 = sld [smem:[#allocation3 + $0x282]]
    %v301 = vstv %s300
    %v302 = vmul.f32 %v104, %v301
    %v303 = vadd.f32 %v299, %v302
    %s304 = sld [smem:[#allocation3 + $0x283]]
    %v305 = vstv %s304
    %v306 = vmul.f32 %v106, %v305
    %v307 = vadd.f32 %v303, %v306
    %s308 = sld [smem:[#allocation3 + $0x284]]
    %v309 = vstv %s308
    %v310 = vmul.f32 %v108, %v309
    %v311 = vadd.f32 %v307, %v310
    %s312 = sld [smem:[#allocation3 + $0x285]]
    %v313 = vstv %s312
    %v314 = vmul.f32 %v110, %v313
    %v315 = vadd.f32 %v311, %v314
    %s316 = sld [smem:[#allocation3 + $0x286]]
    %v317 = vstv %s316
    %v318 = vmul.f32 %v112, %v317
    %v319 = vadd.f32 %v315, %v318
    %s320 = sld [smem:[#allocation3 + $0x287]]
    %v321 = vstv %s320
    %v322 = vmul.f32 %v114, %v321
    %v323 = vadd.f32 %v319, %v322
    %v324 = vtanh.pop %v323
    %s325 = sld [smem:[#allocation9]]
    %v326 = vstv %s325
    %v327 = vmul.f32 %v149, %v326
    %s328 = sld [smem:[#allocation11]]
    %v329 = vstv %s328
    %v330 = vadd.f32 %v327, %v329
    %s331 = sld [smem:[#allocation9 + $0x1]]
    %v332 = vstv %s331
    %v333 = vmul.f32 %v184, %v332
    %v334 = vadd.f32 %v330, %v333
    %s335 = sld [smem:[#allocation9 + $0x2]]
    %v336 = vstv %s335
    %v337 = vmul.f32 %v219, %v336
    %v338 = vadd.f32 %v334, %v337
    %s339 = sld [smem:[#allocation9 + $0x3]]
    %v340 = vstv %s339
    %v341 = vmul.f32 %v254, %v340
    %v342 = vadd.f32 %v338, %v341
    %s343 = sld [smem:[#allocation9 + $0x4]]
    %v344 = vstv %s343
    %v345 = vmul.f32 %v289, %v344
    %v346 = vadd.f32 %v342, %v345
    %s347 = sld [smem:[#allocation9 + $0x5]]
    %v348 = vstv %s347
    %v349 = vmul.f32 %v324, %v348
    %v350 = vadd.f32 %v346, %v349
    %v351 = vtanh.pop %v350
    %s352 = sld [smem:[#allocation9 + $0x80]]
    %v353 = vstv %s352
    %v354 = vmul.f32 %v149, %v353
    %s355 = sld [smem:[#allocation11 + $0x1]]
    %v356 = vstv %s355
    %v357 = vadd.f32 %v354, %v356
    %s358 = sld [smem:[#allocation9 + $0x81]]
    %v359 = vstv %s358
    %v360 = vmul.f32 %v184, %v359
    %v361 = vadd.f32 %v357, %v360
    %s362 = sld [smem:[#allocation9 + $0x82]]
    %v363 = vstv %s362
    %v364 = vmul.f32 %v219, %v363
    %v365 = vadd.f32 %v361, %v364
    %s366 = sld [smem:[#allocation9 + $0x83]]
    %v367 = vstv %s366
    %v368 = vmul.f32 %v254, %v367
    %v369 = vadd.f32 %v365, %v368
    %s370 = sld [smem:[#allocation9 + $0x84]]
    %v371 = vstv %s370
    %v372 = vmul.f32 %v289, %v371
    %v373 = vadd.f32 %v369, %v372
    %s374 = sld [smem:[#allocation9 + $0x85]]
    %v375 = vstv %s374
    %v376 = vmul.f32 %v324, %v375
    %v377 = vadd.f32 %v373, %v376
    %v378 = vtanh.pop %v377
    %s379 = sld [smem:[#allocation9 + $0x100]]
    %v380 = vstv %s379
    %v381 = vmul.f32 %v149, %v380
    %s382 = sld [smem:[#allocation11 + $0x2]]
    %v383 = vstv %s382
    %v384 = vadd.f32 %v381, %v383
    %s385 = sld [smem:[#allocation9 + $0x101]]
    %v386 = vstv %s385
    %v387 = vmul.f32 %v184, %v386
    %v388 = vadd.f32 %v384, %v387
    %s389 = sld [smem:[#allocation9 + $0x102]]
    %v390 = vstv %s389
    %v391 = vmul.f32 %v219, %v390
    %v392 = vadd.f32 %v388, %v391
    %s393 = sld [smem:[#allocation9 + $0x103]]
    %v394 = vstv %s393
    %v395 = vmul.f32 %v254, %v394
    %v396 = vadd.f32 %v392, %v395
    %s397 = sld [smem:[#allocation9 + $0x104]]
    %v398 = vstv %s397
    %v399 = vmul.f32 %v289, %v398
    %v400 = vadd.f32 %v396, %v399
    %s401 = sld [smem:[#allocation9 + $0x105]]
    %v402 = vstv %s401
    %v403 = vmul.f32 %v324, %v402
    %v404 = vadd.f32 %v400, %v403
    %v405 = vtanh.pop %v404
    %s406 = sld [smem:[#allocation9 + $0x180]]
    %v407 = vstv %s406
    %v408 = vmul.f32 %v149, %v407
    %s409 = sld [smem:[#allocation11 + $0x3]]
    %v410 = vstv %s409
    %v411 = vadd.f32 %v408, %v410
    %s412 = sld [smem:[#allocation9 + $0x181]]
    %v413 = vstv %s412
    %v414 = vmul.f32 %v184, %v413
    %v415 = vadd.f32 %v411, %v414
    %s416 = sld [smem:[#allocation9 + $0x182]]
    %v417 = vstv %s416
    %v418 = vmul.f32 %v219, %v417
    %v419 = vadd.f32 %v415, %v418
    %s420 = sld [smem:[#allocation9 + $0x183]]
    %v421 = vstv %s420
    %v422 = vmul.f32 %v254, %v421
    %v423 = vadd.f32 %v419, %v422
    %s424 = sld [smem:[#allocation9 + $0x184]]
    %v425 = vstv %s424
    %v426 = vmul.f32 %v289, %v425
    %v427 = vadd.f32 %v423, %v426
    %s428 = sld [smem:[#allocation9 + $0x185]]
    %v429 = vstv %s428
    %v430 = vmul.f32 %v324, %v429
    %v431 = vadd.f32 %v427, %v430
    %v432 = vtanh.pop %v431
    %s433 = sld [smem:[#allocation12]]
    %v434 = vstv %s433
    %v435 = vmul.f32 %v351, %v434
    %s436 = sld [smem:[#allocation2]]
    %v437 = vstv %s436
    %v438 = vadd.f32 %v435, %v437
    %s439 = sld [smem:[#allocation12 + $0x1]]
    %v440 = vstv %s439
    %v441 = vmul.f32 %v378, %v440
    %v442 = vadd.f32 %v438, %v441
    %s443 = sld [smem:[#allocation12 + $0x2]]
    %v444 = vstv %s443
    %v445 = vmul.f32 %v405, %v444
    %v446 = vadd.f32 %v442, %v445
    %s447 = sld [smem:[#allocation12 + $0x3]]
    %v448 = vstv %s447
    %v449 = vmul.f32 %v432, %v448
    %v450 = vadd.f32 %v446, %v449
    %v451 = vtanh.pop %v450
    %v452 = vmul.f32 %v451, 0.5
    %v453 = vadd.f32 %v452, 0.5
    %454 = vst [vmem:[#allocation15] sm:$0xff] %v453
    // Predicated region
    $region54: #{tpu_custom_call.1} parent=1 // pred_check
      _
    $region55: #{tpu_custom_call.1} parent=1 // pred_check_branch
      %456 = sbr.rel (0) target = $region57
    $region56: #{tpu_custom_call.1} parent=1 // pred_region
      %s458 = ssub.s32 128, 128
      %459 = vsyncadd [#allocation5], %s458
      %s461 = sshll.u32 [#allocation15], 4
      %s462 = int_to_ptr.vmem [resolvable:$true] %s461
      %464 = dma.vmem_to_hbm [thread:$0]  %s462, 128, %s7, [#allocation5]
    $region57: #{tpu_custom_call.1} parent=1 // pred_fallthru
      _
    // Predicated region
    $region58: #{tpu_custom_call.1} parent=1 // pred_check
      _
    $region59: #{tpu_custom_call.1} parent=1 // pred_check_branch
      %466 = sbr.rel (0) target = $region61
    $region60: #{tpu_custom_call.1} parent=1 // pred_region
      %467 = dma.done [#allocation5], 128
    $region61: #{tpu_custom_call.1} parent=1 // pred_fallthru
      _
    %468 = vsyncpa [#allocation4], 1
    %469 = vsyncpa [#allocation5], 1
    %470 = vsyncpa [#allocation6], 1
    %471 = vsyncpa [#allocation7], 1
    %472 = vsyncpa [#allocation10], 1
    %473 = vsyncpa [#allocation13], 1

</llo_original>
